<compile_context>
chip_gen: v5e
topology: v5e:2x2
jax: 0.10.0
libtpu: 0.0.40
codegen_flags: <defaults>
</compile_context>

<pallas_src>
import jax
import jax.numpy as jnp
from jax.experimental import pallas as pl
from jax.experimental.pallas import tpu as pltpu


# ----------------------------- config ------------------------------------- #
class Config:
    hiddenSize = 32
    numLayers = 2
    activation = "elu"
    uniformMix = 0.01


INPUT_SIZE = 32
LATENT_LENGTH = 8
LATENT_CLASSES = 8
LATENT_SIZE = LATENT_LENGTH * LATENT_CLASSES
BATCH = 2

_F32_EPS = 1.1920929e-07  # torch.finfo(torch.float32).eps (used by clamp_probs)
_F32_TINY = 1e-30         # guard against a fully-underflowed group / padded garbage rows


# --------------------------- fused Pallas kernel --------------------------- #
def make_prior_kernel(num_hidden_layers, latent_length, latent_classes, uniform_mix):
    """MLP -> per-group softmax -> uniform mix -> probs_to_logits -> Gumbel-max sample.

    The kernel works on a 128-lane slab: the final layer weights are duplicated so
    raw logits appear twice (lanes [0,64) and [64,128)); lanes [0,64) of the output
    hold the one-hot sample, lanes [64,128) hold the logits.
    """
    L, C = latent_length, latent_classes
    latent_size = L * C
    num_param_refs = 2 * (num_hidden_layers + 1)

    def kernel(*refs):
        x_ref = refs[0]
        p_refs = refs[1:1 + num_param_refs]          # w1, b1, ..., w_out(dup), b_out(dup)
        bd_ref = refs[1 + num_param_refs]            # (2*L*C, 2*L*C) block-diag ones
        gum_ref = refs[2 + num_param_refs]           # (tile, 2*L*C) Gumbel noise
        out_ref = refs[-1]                           # (tile, 2*L*C) fused output slab

        # ---- MLP: [Linear -> ELU] * numLayers -> Linear (no final activation) ----
        h = x_ref[...]
        for i in range(num_hidden_layers):
            w = p_refs[2 * i][...]
            b = p_refs[2 * i + 1][...]
            h = jnp.dot(h, w, preferred_element_type=jnp.float32) + b
            # ELU(alpha=1); guard the exp so the unselected branch stays finite.
            h = jnp.where(h > 0, h, jnp.exp(jnp.minimum(h, 0.0)) - 1.0)
        # Duplicated final layer -> (tile, 128): two identical 64-lane copies of raw logits.
        raw = (jnp.dot(h, p_refs[-2][...], preferred_element_type=jnp.float32)
               + p_refs[-1][...])

        # ---- per-group softmax; one global row max is a valid per-group stabilizer ----
        m = jnp.max(raw, axis=-1, keepdims=True)
        e = jnp.exp(raw - m)
        # Segment-sum + broadcast-to-every-lane in ONE small MXU matmul (MXU is idle here).
        s = jnp.dot(e, bd_ref[...], preferred_element_type=jnp.float32)
        p = e / jnp.maximum(s, _F32_TINY)
        p = (1.0 - uniform_mix) * p + (uniform_mix / C)     # uniform mixture
        p = jnp.clip(p, _F32_EPS, 1.0 - _F32_EPS)           # torch clamp_probs
        logits = jnp.log(p)                                  # probs_to_logits

        # ---- Gumbel-max one-hot categorical sample (straight-through forward) ----
        z = logits + gum_ref[...]
        lane = jax.lax.broadcasted_iota(jnp.int32, z.shape, 1)
        # group id per lane without integer division: exact for these small values
        gid = jnp.floor(lane.astype(jnp.float32) * (1.0 / C))
        neg_inf = jnp.float32(-jnp.inf)
        sample = jnp.zeros_like(z)
        # Single merged pass over the L groups that feed the sample half (lanes [0, L*C)):
        # one masked max-reduction + one select per group; no tie-break reduction.
        for g in range(L):
            mask = gid == jnp.float32(g)
            zmax_g = jnp.max(jnp.where(mask, z, neg_inf), axis=-1, keepdims=True)
            sample = jnp.where(mask & (z == zmax_g), 1.0, sample)

        # Fused lane-dense output slab: [sample (L*C lanes) | logits (L*C lanes)],
        # stored with a single unmasked full-width (128-lane) store.
        out_ref[...] = jnp.where(lane < latent_size, sample, logits)

    return kernel


# ------------------------------ wrapper ------------------------------------ #
def init_params(key, input_size, hidden_size, num_layers, latent_size):
    """Deterministic Linear-style init: U(-1/sqrt(fan_in), 1/sqrt(fan_in))."""
    sizes = [input_size] + [hidden_size] * num_layers + [latent_size]
    params = []
    for i in range(len(sizes) - 1):
        fan_in, fan_out = sizes[i], sizes[i + 1]
        key, kw, kb = jax.random.split(key, 3)
        bound = 1.0 / jnp.sqrt(jnp.float32(fan_in))
        w = jax.random.uniform(kw, (fan_in, fan_out), jnp.float32, -bound, bound)
        b = jax.random.uniform(kb, (1, fan_out), jnp.float32, -bound, bound)
        params += [w, b]
    return params


def _round_up(n, m):
    return ((n + m - 1) // m) * m


def _choose_batch_tile(batch):
    # Tiny batches: run whole (block dims equal to full array dims are always legal).
    if batch <= 8:
        return batch
    # Moderate/large batches: at least 2 grid steps (keeps both TensorCores busy on
    # 2-core chips), tile rows a multiple of 8, capped at 1024 rows (per-row working
    # set is <1 KiB, so even 1024-row tiles are a few MiB of VMEM with double buffering).
    return min(1024, _round_up(pl.cdiv(batch, 2), 8))


def prior_net_forward(x, params, gumbel, config, latent_length, latent_classes):
    batch, in_features = x.shape
    latent_size = latent_length * latent_classes
    slab = 2 * latent_size
    assert gumbel.shape == (batch, latent_size)

    # Duplicate the final Linear along the output dim -> raw logits come out 128 wide.
    *hidden_params, w_out, b_out = params
    w_out2 = jnp.concatenate([w_out, w_out], axis=1)           # (hidden, 2*L*C)
    b_out2 = jnp.concatenate([b_out, b_out], axis=1)           # (1, 2*L*C)
    kparams = list(hidden_params) + [w_out2, b_out2]

    # Block-diagonal ones matrix: e @ bd does the per-group sum and broadcasts it to
    # every lane of the group in a single MXU op.
    gid = jnp.arange(slab, dtype=jnp.int32) // latent_classes
    bd = (gid[:, None] == gid[None, :]).astype(jnp.float32)    # (2*L*C, 2*L*C)

    # Present Gumbel noise at slab width (lanes >= latent_size are never used).
    gum2 = jnp.concatenate([gumbel, gumbel], axis=1)

    tb = _choose_batch_tile(batch)
    grid = (pl.cdiv(batch, tb),)

    in_specs = [pl.BlockSpec((tb, in_features), lambda i: (i, 0))]         # x: tiled over batch
    in_specs += [pl.BlockSpec(p.shape, lambda i: (0, 0)) for p in kparams]  # weights resident
    in_specs += [pl.BlockSpec(bd.shape, lambda i: (0, 0))]                  # block-diag resident
    in_specs += [pl.BlockSpec((tb, slab), lambda i: (i, 0))]                # gumbel: tiled

    kernel = make_prior_kernel(config.numLayers, latent_length, latent_classes,
                               float(config.uniformMix))

    out = pl.pallas_call(
        kernel,
        grid=grid,
        in_specs=in_specs,
        out_specs=pl.BlockSpec((tb, slab), lambda i: (i, 0)),
        out_shape=jax.ShapeDtypeStruct((batch, slab), jnp.float32),
        compiler_params=pltpu.CompilerParams(
            dimension_semantics=("parallel",),
        ),
    )(x, *kparams, bd, gum2)

    sample = out[:, :latent_size]
    logits = out[:, latent_size:].reshape(batch, latent_length, latent_classes)
    return sample, logits


# ------------------------------- main -------------------------------------- #
if __name__ == "__main__":
    key = jax.random.PRNGKey(0)
    kx, kp, kg = jax.random.split(key, 3)

    x = jax.random.normal(kx, (BATCH, INPUT_SIZE), jnp.float32)
    params = init_params(kp, INPUT_SIZE, Config.hiddenSize, Config.numLayers, LATENT_SIZE)
    gumbel = jax.random.gumbel(kg, (BATCH, LATENT_SIZE), dtype=jnp.float32)

    sample, logits = prior_net_forward(
        x, params, gumbel, Config, LATENT_LENGTH, LATENT_CLASSES
    )
    sample = jax.block_until_ready(sample)
    logits = jax.block_until_ready(logits)

    # sanity checks
    assert sample.shape == (BATCH, LATENT_SIZE)
    assert logits.shape == (BATCH, LATENT_LENGTH, LATENT_CLASSES)
    row_sums = sample.reshape(BATCH * LATENT_LENGTH, LATENT_CLASSES).sum(axis=-1)
    assert bool(jnp.all(row_sums == 1.0)), "sample rows are not one-hot"
    assert bool(jnp.all(jnp.isfinite(logits))), "non-finite logits"
    # mixed probabilities recovered from logits should sum to ~1 per latent group
    probs_check = jnp.exp(logits).sum(axis=-1)
    assert bool(jnp.all(jnp.abs(probs_check - 1.0) < 1e-4)), "probs do not sum to 1"

    print("KERNEL_OK")
</pallas_src>

<mosaic_0001>
module attributes {stable_mosaic.version = 11 : i64} {
  func.func @kernel(%arg0: i32, %arg1: memref<2x32xf32, #tpu.memory_space<vmem>>, %arg2: memref<32x32xf32, #tpu.memory_space<vmem>>, %arg3: memref<1x32xf32, #tpu.memory_space<vmem>>, %arg4: memref<32x32xf32, #tpu.memory_space<vmem>>, %arg5: memref<1x32xf32, #tpu.memory_space<vmem>>, %arg6: memref<32x128xf32, #tpu.memory_space<vmem>>, %arg7: memref<1x128xf32, #tpu.memory_space<vmem>>, %arg8: memref<128x128xf32, #tpu.memory_space<vmem>>, %arg9: memref<2x128xf32, #tpu.memory_space<vmem>>, %arg10: memref<2x128xf32, #tpu.memory_space<vmem>>) attributes {dimension_semantics = [#tpu.dimension_semantics<parallel>], iteration_bounds = array<i64: 1>, scalar_prefetch = 0 : i64, scratch_operands = 0 : i64, tpu.core_type = #tpu.core_type<tc>, window_params = [{transform_indices = @transform_0, window_bounds = array<i64: 2, 32>}, {pipeline_mode = #tpu.pipeline_mode<synchronous>, transform_indices = @transform_1, window_bounds = array<i64: 32, 32>}, {pipeline_mode = #tpu.pipeline_mode<synchronous>, transform_indices = @transform_2, window_bounds = array<i64: 1, 32>}, {pipeline_mode = #tpu.pipeline_mode<synchronous>, transform_indices = @transform_3, window_bounds = array<i64: 32, 32>}, {pipeline_mode = #tpu.pipeline_mode<synchronous>, transform_indices = @transform_4, window_bounds = array<i64: 1, 32>}, {pipeline_mode = #tpu.pipeline_mode<synchronous>, transform_indices = @transform_5, window_bounds = array<i64: 32, 128>}, {pipeline_mode = #tpu.pipeline_mode<synchronous>, transform_indices = @transform_6, window_bounds = array<i64: 1, 128>}, {pipeline_mode = #tpu.pipeline_mode<synchronous>, transform_indices = @transform_7, window_bounds = array<i64: 128, 128>}, {transform_indices = @transform_8, window_bounds = array<i64: 2, 128>}, {transform_indices = @transform_9, window_bounds = array<i64: 2, 128>}]} {
    %c0 = arith.constant 0 : index
    %c0_0 = arith.constant 0 : index
    %0 = vector.load %arg1[%c0, %c0_0] : memref<2x32xf32, #tpu.memory_space<vmem>>, vector<2x32xf32>
    %c0_1 = arith.constant 0 : index
    %c0_2 = arith.constant 0 : index
    %1 = vector.load %arg2[%c0_1, %c0_2] : memref<32x32xf32, #tpu.memory_space<vmem>>, vector<32x32xf32>
    %c0_3 = arith.constant 0 : index
    %c0_4 = arith.constant 0 : index
    %2 = vector.load %arg3[%c0_3, %c0_4] : memref<1x32xf32, #tpu.memory_space<vmem>>, vector<1x32xf32>
    %cst = arith.constant dense<0.000000e+00> : vector<2x32xf32>
    %3 = tpu.matmul %0, %1, %cst {dimension_numbers = #tpu.dot_dimension_numbers<[1], [0], [0], [1], [0, 0, 1, 1], [], []>} : vector<2x32xf32>, vector<32x32xf32>, vector<2x32xf32> -> vector<2x32xf32>
    %4 = vector.broadcast %2 : vector<1x32xf32> to vector<2x32xf32>
    %5 = arith.addf %3, %4 : vector<2x32xf32>
    %cst_5 = arith.constant 0.000000e+00 : f32
    %6 = vector.broadcast %cst_5 : f32 to vector<2x32xf32>
    %7 = arith.cmpf ogt, %5, %6 : vector<2x32xf32>
    %cst_6 = arith.constant 0.000000e+00 : f32
    %8 = vector.broadcast %cst_6 : f32 to vector<2x32xf32>
    %9 = arith.minimumf %5, %8 : vector<2x32xf32>
    %10 = math.exp %9 : vector<2x32xf32>
    %cst_7 = arith.constant 1.000000e+00 : f32
    %11 = vector.broadcast %cst_7 : f32 to vector<2x32xf32>
    %12 = arith.subf %10, %11 : vector<2x32xf32>
    %13 = arith.select %7, %5, %12 : vector<2x32xi1>, vector<2x32xf32>
    %c0_8 = arith.constant 0 : index
    %c0_9 = arith.constant 0 : index
    %14 = vector.load %arg4[%c0_8, %c0_9] : memref<32x32xf32, #tpu.memory_space<vmem>>, vector<32x32xf32>
    %c0_10 = arith.constant 0 : index
    %c0_11 = arith.constant 0 : index
    %15 = vector.load %arg5[%c0_10, %c0_11] : memref<1x32xf32, #tpu.memory_space<vmem>>, vector<1x32xf32>
    %cst_12 = arith.constant dense<0.000000e+00> : vector<2x32xf32>
    %16 = tpu.matmul %13, %14, %cst_12 {dimension_numbers = #tpu.dot_dimension_numbers<[1], [0], [0], [1], [0, 0, 1, 1], [], []>} : vector<2x32xf32>, vector<32x32xf32>, vector<2x32xf32> -> vector<2x32xf32>
    %17 = vector.broadcast %15 : vector<1x32xf32> to vector<2x32xf32>
    %18 = arith.addf %16, %17 : vector<2x32xf32>
    %cst_13 = arith.constant 0.000000e+00 : f32
    %19 = vector.broadcast %cst_13 : f32 to vector<2x32xf32>
    %20 = arith.cmpf ogt, %18, %19 : vector<2x32xf32>
    %cst_14 = arith.constant 0.000000e+00 : f32
    %21 = vector.broadcast %cst_14 : f32 to vector<2x32xf32>
    %22 = arith.minimumf %18, %21 : vector<2x32xf32>
    %23 = math.exp %22 : vector<2x32xf32>
    %cst_15 = arith.constant 1.000000e+00 : f32
    %24 = vector.broadcast %cst_15 : f32 to vector<2x32xf32>
    %25 = arith.subf %23, %24 : vector<2x32xf32>
    %26 = arith.select %20, %18, %25 : vector<2x32xi1>, vector<2x32xf32>
    %c0_16 = arith.constant 0 : index
    %c0_17 = arith.constant 0 : index
    %27 = vector.load %arg6[%c0_16, %c0_17] : memref<32x128xf32, #tpu.memory_space<vmem>>, vector<32x128xf32>
    %cst_18 = arith.constant dense<0.000000e+00> : vector<2x128xf32>
    %28 = tpu.matmul %26, %27, %cst_18 {dimension_numbers = #tpu.dot_dimension_numbers<[1], [0], [0], [1], [0, 0, 1, 1], [], []>} : vector<2x32xf32>, vector<32x128xf32>, vector<2x128xf32> -> vector<2x128xf32>
    %c0_19 = arith.constant 0 : index
    %c0_20 = arith.constant 0 : index
    %29 = vector.load %arg7[%c0_19, %c0_20] : memref<1x128xf32, #tpu.memory_space<vmem>>, vector<1x128xf32>
    %30 = vector.broadcast %29 : vector<1x128xf32> to vector<2x128xf32>
    %31 = arith.addf %28, %30 : vector<2x128xf32>
    %cst_21 = arith.constant dense<0xFF800000> : vector<2xf32>
    %32 = vector.multi_reduction <maximumf>, %31, %cst_21 [1] : vector<2x128xf32> to vector<2xf32>
    %33 = vector.shape_cast %32 : vector<2xf32> to vector<2x1xf32>
    %34 = vector.broadcast %33 : vector<2x1xf32> to vector<2x128xf32>
    %35 = arith.subf %31, %34 : vector<2x128xf32>
    %36 = math.exp %35 : vector<2x128xf32>
    %c0_22 = arith.constant 0 : index
    %c0_23 = arith.constant 0 : index
    %37 = vector.load %arg8[%c0_22, %c0_23] : memref<128x128xf32, #tpu.memory_space<vmem>>, vector<128x128xf32>
    %cst_24 = arith.constant dense<0.000000e+00> : vector<2x128xf32>
    %38 = tpu.matmul %36, %37, %cst_24 {dimension_numbers = #tpu.dot_dimension_numbers<[1], [0], [0], [1], [0, 0, 1, 1], [], []>} : vector<2x128xf32>, vector<128x128xf32>, vector<2x128xf32> -> vector<2x128xf32>
    %cst_25 = arith.constant 1.000000e-30 : f32
    %39 = vector.broadcast %cst_25 : f32 to vector<2x128xf32>
    %40 = arith.maximumf %38, %39 : vector<2x128xf32>
    %41 = arith.divf %36, %40 : vector<2x128xf32>
    %cst_26 = arith.constant 9.900000e-01 : f32
    %42 = vector.broadcast %cst_26 : f32 to vector<2x128xf32>
    %43 = arith.mulf %42, %41 : vector<2x128xf32>
    %cst_27 = arith.constant 1.250000e-03 : f32
    %44 = vector.broadcast %cst_27 : f32 to vector<2x128xf32>
    %45 = arith.addf %43, %44 : vector<2x128xf32>
    %cst_28 = arith.constant 1.1920929E-7 : f32
    %cst_29 = arith.constant 0.99999988 : f32
    %46 = vector.broadcast %cst_28 : f32 to vector<2x128xf32>
    %47 = arith.maximumf %46, %45 : vector<2x128xf32>
    %48 = vector.broadcast %cst_29 : f32 to vector<2x128xf32>
    %49 = arith.minimumf %48, %47 : vector<2x128xf32>
    %50 = math.log %49 : vector<2x128xf32>
    %c0_30 = arith.constant 0 : index
    %c0_31 = arith.constant 0 : index
    %51 = vector.load %arg9[%c0_30, %c0_31] : memref<2x128xf32, #tpu.memory_space<vmem>>, vector<2x128xf32>
    %52 = arith.addf %50, %51 : vector<2x128xf32>
    %53 = tpu.iota {dimensions = array<i32: 1>} : vector<2x128xi32>
    %54 = arith.sitofp %53 : vector<2x128xi32> to vector<2x128xf32>
    %cst_32 = arith.constant 1.250000e-01 : f32
    %55 = vector.broadcast %cst_32 : f32 to vector<2x128xf32>
    %56 = arith.mulf %54, %55 : vector<2x128xf32>
    %57 = math.floor %56 : vector<2x128xf32>
    %cst_33 = arith.constant 0.000000e+00 : f32
    %58 = vector.broadcast %cst_33 : f32 to vector<2x128xf32>
    %cst_34 = arith.constant 0.000000e+00 : f32
    %59 = vector.broadcast %cst_34 : f32 to vector<2x128xf32>
    %60 = arith.cmpf oeq, %57, %59 : vector<2x128xf32>
    %cst_35 = arith.constant 0xFF800000 : f32
    %61 = vector.broadcast %cst_35 : f32 to vector<2x128xf32>
    %62 = arith.select %60, %52, %61 : vector<2x128xi1>, vector<2x128xf32>
    %cst_36 = arith.constant dense<0xFF800000> : vector<2xf32>
    %63 = vector.multi_reduction <maximumf>, %62, %cst_36 [1] : vector<2x128xf32> to vector<2xf32>
    %64 = vector.shape_cast %63 : vector<2xf32> to vector<2x1xf32>
    %65 = vector.broadcast %64 : vector<2x1xf32> to vector<2x128xf32>
    %66 = arith.cmpf oeq, %52, %65 : vector<2x128xf32>
    %67 = arith.andi %60, %66 : vector<2x128xi1>
    %cst_37 = arith.constant 1.000000e+00 : f32
    %68 = vector.broadcast %cst_37 : f32 to vector<2x128xf32>
    %69 = arith.select %67, %68, %58 : vector<2x128xi1>, vector<2x128xf32>
    %cst_38 = arith.constant 1.000000e+00 : f32
    %70 = vector.broadcast %cst_38 : f32 to vector<2x128xf32>
    %71 = arith.cmpf oeq, %57, %70 : vector<2x128xf32>
    %cst_39 = arith.constant 0xFF800000 : f32
    %72 = vector.broadcast %cst_39 : f32 to vector<2x128xf32>
    %73 = arith.select %71, %52, %72 : vector<2x128xi1>, vector<2x128xf32>
    %cst_40 = arith.constant dense<0xFF800000> : vector<2xf32>
    %74 = vector.multi_reduction <maximumf>, %73, %cst_40 [1] : vector<2x128xf32> to vector<2xf32>
    %75 = vector.shape_cast %74 : vector<2xf32> to vector<2x1xf32>
    %76 = vector.broadcast %75 : vector<2x1xf32> to vector<2x128xf32>
    %77 = arith.cmpf oeq, %52, %76 : vector<2x128xf32>
    %78 = arith.andi %71, %77 : vector<2x128xi1>
    %cst_41 = arith.constant 1.000000e+00 : f32
    %79 = vector.broadcast %cst_41 : f32 to vector<2x128xf32>
    %80 = arith.select %78, %79, %69 : vector<2x128xi1>, vector<2x128xf32>
    %cst_42 = arith.constant 2.000000e+00 : f32
    %81 = vector.broadcast %cst_42 : f32 to vector<2x128xf32>
    %82 = arith.cmpf oeq, %57, %81 : vector<2x128xf32>
    %cst_43 = arith.constant 0xFF800000 : f32
    %83 = vector.broadcast %cst_43 : f32 to vector<2x128xf32>
    %84 = arith.select %82, %52, %83 : vector<2x128xi1>, vector<2x128xf32>
    %cst_44 = arith.constant dense<0xFF800000> : vector<2xf32>
    %85 = vector.multi_reduction <maximumf>, %84, %cst_44 [1] : vector<2x128xf32> to vector<2xf32>
    %86 = vector.shape_cast %85 : vector<2xf32> to vector<2x1xf32>
    %87 = vector.broadcast %86 : vector<2x1xf32> to vector<2x128xf32>
    %88 = arith.cmpf oeq, %52, %87 : vector<2x128xf32>
    %89 = arith.andi %82, %88 : vector<2x128xi1>
    %cst_45 = arith.constant 1.000000e+00 : f32
    %90 = vector.broadcast %cst_45 : f32 to vector<2x128xf32>
    %91 = arith.select %89, %90, %80 : vector<2x128xi1>, vector<2x128xf32>
    %cst_46 = arith.constant 3.000000e+00 : f32
    %92 = vector.broadcast %cst_46 : f32 to vector<2x128xf32>
    %93 = arith.cmpf oeq, %57, %92 : vector<2x128xf32>
    %cst_47 = arith.constant 0xFF800000 : f32
    %94 = vector.broadcast %cst_47 : f32 to vector<2x128xf32>
    %95 = arith.select %93, %52, %94 : vector<2x128xi1>, vector<2x128xf32>
    %cst_48 = arith.constant dense<0xFF800000> : vector<2xf32>
    %96 = vector.multi_reduction <maximumf>, %95, %cst_48 [1] : vector<2x128xf32> to vector<2xf32>
    %97 = vector.shape_cast %96 : vector<2xf32> to vector<2x1xf32>
    %98 = vector.broadcast %97 : vector<2x1xf32> to vector<2x128xf32>
    %99 = arith.cmpf oeq, %52, %98 : vector<2x128xf32>
    %100 = arith.andi %93, %99 : vector<2x128xi1>
    %cst_49 = arith.constant 1.000000e+00 : f32
    %101 = vector.broadcast %cst_49 : f32 to vector<2x128xf32>
    %102 = arith.select %100, %101, %91 : vector<2x128xi1>, vector<2x128xf32>
    %cst_50 = arith.constant 4.000000e+00 : f32
    %103 = vector.broadcast %cst_50 : f32 to vector<2x128xf32>
    %104 = arith.cmpf oeq, %57, %103 : vector<2x128xf32>
    %cst_51 = arith.constant 0xFF800000 : f32
    %105 = vector.broadcast %cst_51 : f32 to vector<2x128xf32>
    %106 = arith.select %104, %52, %105 : vector<2x128xi1>, vector<2x128xf32>
    %cst_52 = arith.constant dense<0xFF800000> : vector<2xf32>
    %107 = vector.multi_reduction <maximumf>, %106, %cst_52 [1] : vector<2x128xf32> to vector<2xf32>
    %108 = vector.shape_cast %107 : vector<2xf32> to vector<2x1xf32>
    %109 = vector.broadcast %108 : vector<2x1xf32> to vector<2x128xf32>
    %110 = arith.cmpf oeq, %52, %109 : vector<2x128xf32>
    %111 = arith.andi %104, %110 : vector<2x128xi1>
    %cst_53 = arith.constant 1.000000e+00 : f32
    %112 = vector.broadcast %cst_53 : f32 to vector<2x128xf32>
    %113 = arith.select %111, %112, %102 : vector<2x128xi1>, vector<2x128xf32>
    %cst_54 = arith.constant 5.000000e+00 : f32
    %114 = vector.broadcast %cst_54 : f32 to vector<2x128xf32>
    %115 = arith.cmpf oeq, %57, %114 : vector<2x128xf32>
    %cst_55 = arith.constant 0xFF800000 : f32
    %116 = vector.broadcast %cst_55 : f32 to vector<2x128xf32>
    %117 = arith.select %115, %52, %116 : vector<2x128xi1>, vector<2x128xf32>
    %cst_56 = arith.constant dense<0xFF800000> : vector<2xf32>
    %118 = vector.multi_reduction <maximumf>, %117, %cst_56 [1] : vector<2x128xf32> to vector<2xf32>
    %119 = vector.shape_cast %118 : vector<2xf32> to vector<2x1xf32>
    %120 = vector.broadcast %119 : vector<2x1xf32> to vector<2x128xf32>
    %121 = arith.cmpf oeq, %52, %120 : vector<2x128xf32>
    %122 = arith.andi %115, %121 : vector<2x128xi1>
    %cst_57 = arith.constant 1.000000e+00 : f32
    %123 = vector.broadcast %cst_57 : f32 to vector<2x128xf32>
    %124 = arith.select %122, %123, %113 : vector<2x128xi1>, vector<2x128xf32>
    %cst_58 = arith.constant 6.000000e+00 : f32
    %125 = vector.broadcast %cst_58 : f32 to vector<2x128xf32>
    %126 = arith.cmpf oeq, %57, %125 : vector<2x128xf32>
    %cst_59 = arith.constant 0xFF800000 : f32
    %127 = vector.broadcast %cst_59 : f32 to vector<2x128xf32>
    %128 = arith.select %126, %52, %127 : vector<2x128xi1>, vector<2x128xf32>
    %cst_60 = arith.constant dense<0xFF800000> : vector<2xf32>
    %129 = vector.multi_reduction <maximumf>, %128, %cst_60 [1] : vector<2x128xf32> to vector<2xf32>
    %130 = vector.shape_cast %129 : vector<2xf32> to vector<2x1xf32>
    %131 = vector.broadcast %130 : vector<2x1xf32> to vector<2x128xf32>
    %132 = arith.cmpf oeq, %52, %131 : vector<2x128xf32>
    %133 = arith.andi %126, %132 : vector<2x128xi1>
    %cst_61 = arith.constant 1.000000e+00 : f32
    %134 = vector.broadcast %cst_61 : f32 to vector<2x128xf32>
    %135 = arith.select %133, %134, %124 : vector<2x128xi1>, vector<2x128xf32>
    %cst_62 = arith.constant 7.000000e+00 : f32
    %136 = vector.broadcast %cst_62 : f32 to vector<2x128xf32>
    %137 = arith.cmpf oeq, %57, %136 : vector<2x128xf32>
    %cst_63 = arith.constant 0xFF800000 : f32
    %138 = vector.broadcast %cst_63 : f32 to vector<2x128xf32>
    %139 = arith.select %137, %52, %138 : vector<2x128xi1>, vector<2x128xf32>
    %cst_64 = arith.constant dense<0xFF800000> : vector<2xf32>
    %140 = vector.multi_reduction <maximumf>, %139, %cst_64 [1] : vector<2x128xf32> to vector<2xf32>
    %141 = vector.shape_cast %140 : vector<2xf32> to vector<2x1xf32>
    %142 = vector.broadcast %141 : vector<2x1xf32> to vector<2x128xf32>
    %143 = arith.cmpf oeq, %52, %142 : vector<2x128xf32>
    %144 = arith.andi %137, %143 : vector<2x128xi1>
    %cst_65 = arith.constant 1.000000e+00 : f32
    %145 = vector.broadcast %cst_65 : f32 to vector<2x128xf32>
    %146 = arith.select %144, %145, %135 : vector<2x128xi1>, vector<2x128xf32>
    %c64_i32 = arith.constant 64 : i32
    %147 = vector.broadcast %c64_i32 : i32 to vector<2x128xi32>
    %148 = arith.cmpi slt, %53, %147 : vector<2x128xi32>
    %149 = arith.select %148, %146, %50 : vector<2x128xi1>, vector<2x128xf32>
    %c0_66 = arith.constant 0 : index
    %c0_67 = arith.constant 0 : index
    %150 = vector.load %arg10[%c0_66, %c0_67] : memref<2x128xf32, #tpu.memory_space<vmem>>, vector<2x128xf32>
    tpu.vector_store %arg10[%c0_66, %c0_67], %149 {strides = array<i32>} : memref<2x128xf32, #tpu.memory_space<vmem>>, vector<2x128xf32>,
    return
  }
  func.func @transform_0(%arg0: i32) -> (i32, i32) {
    %c0_i32 = arith.constant 0 : i32
    %c0_i32_0 = arith.constant 0 : i32
    return %arg0, %c0_i32 : i32, i32
  }
  func.func @transform_1(%arg0: i32) -> (i32, i32) {
    %c0_i32 = arith.constant 0 : i32
    %c0_i32_0 = arith.constant 0 : i32
    %c0_i32_1 = arith.constant 0 : i32
    return %c0_i32, %c0_i32_0 : i32, i32
  }
  func.func @transform_2(%arg0: i32) -> (i32, i32) {
    %c0_i32 = arith.constant 0 : i32
    %c0_i32_0 = arith.constant 0 : i32
    %c0_i32_1 = arith.constant 0 : i32
    return %c0_i32, %c0_i32_0 : i32, i32
  }
  func.func @transform_3(%arg0: i32) -> (i32, i32) {
    %c0_i32 = arith.constant 0 : i32
    %c0_i32_0 = arith.constant 0 : i32
    %c0_i32_1 = arith.constant 0 : i32
    return %c0_i32, %c0_i32_0 : i32, i32
  }
  func.func @transform_4(%arg0: i32) -> (i32, i32) {
    %c0_i32 = arith.constant 0 : i32
    %c0_i32_0 = arith.constant 0 : i32
    %c0_i32_1 = arith.constant 0 : i32
    return %c0_i32, %c0_i32_0 : i32, i32
  }
  func.func @transform_5(%arg0: i32) -> (i32, i32) {
    %c0_i32 = arith.constant 0 : i32
    %c0_i32_0 = arith.constant 0 : i32
    %c0_i32_1 = arith.constant 0 : i32
    return %c0_i32, %c0_i32_0 : i32, i32
  }
  func.func @transform_6(%arg0: i32) -> (i32, i32) {
    %c0_i32 = arith.constant 0 : i32
    %c0_i32_0 = arith.constant 0 : i32
    %c0_i32_1 = arith.constant 0 : i32
    return %c0_i32, %c0_i32_0 : i32, i32
  }
  func.func @transform_7(%arg0: i32) -> (i32, i32) {
    %c0_i32 = arith.constant 0 : i32
    %c0_i32_0 = arith.constant 0 : i32
    %c0_i32_1 = arith.constant 0 : i32
    return %c0_i32, %c0_i32_0 : i32, i32
  }
  func.func @transform_8(%arg0: i32) -> (i32, i32) {
    %c0_i32 = arith.constant 0 : i32
    %c0_i32_0 = arith.constant 0 : i32
    return %arg0, %c0_i32 : i32, i32
  }
  func.func @transform_9(%arg0: i32) -> (i32, i32) {
    %c0_i32 = arith.constant 0 : i32
    %c0_i32_0 = arith.constant 0 : i32
    return %arg0, %c0_i32 : i32, i32
  }
}

</mosaic_0001>

<llo_original>
// kernel: tpu_custom_call.1
$region0: #{tpu_custom_call.1}
  #allocation0 [shape = 'u32[]', space=smem, size = 0x4, offset = 0x4, fixed_abs, tag = 'smem constant byte address 0x4 - core index']
  #allocation1 [shape = 'u32[72,128]{1,0:T(1,128)}', space=vmem, size = 0x9000, scoped, tag = 'internal scratch']
  %s0 = inlined_call_operand.hbm [shape: f32[2,32], index: 0, kind: input, shape index: {}]
  %s1 = inlined_call_operand.hbm [shape: f32[32,32], index: 1, kind: input, shape index: {}]
  %s2 = inlined_call_operand.vmem [shape: f32[1,32], index: 2, kind: input, shape index: {}]
  %s3 = inlined_call_operand.hbm [shape: f32[32,32], index: 3, kind: input, shape index: {}]
  %s4 = inlined_call_operand.hbm [shape: f32[1,32], index: 4, kind: input, shape index: {}]
  %s5 = inlined_call_operand.hbm [shape: f32[32,128], index: 5, kind: input, shape index: {}]
  %s6 = inlined_call_operand.vmem [shape: f32[1,128], index: 6, kind: input, shape index: {}]
  %s7 = inlined_call_operand.hbm [shape: f32[128,128], index: 7, kind: input, shape index: {}]
  %s8 = inlined_call_operand.vmem [shape: f32[2,128], index: 8, kind: input, shape index: {}]
  %s9 = inlined_call_operand.hbm [shape: f32[2,128], index: 9, kind: output, shape index: {}]
  %s10 = sld [smem:[#allocation0]]
  $region70: #{tpu_custom_call.1} parent=0
    _
  %s12 = ssub.s32 1, %s10
  %s13 = scalar_select 0, %s12, %s10
  $region1: #{tpu_custom_call.1} parent=0
    #allocation2 [shape = 'u8[1024]{0}', space=vmem, size = 0x400, scoped, tag = 'input window, operand 0, single buffered']
    #allocation3 [shape = 's32[1]{0}', space=sflag, size = 0x4, scoped, tag = 'scoped memory for tpu_custom_call.1']
    #allocation4 [shape = 's32[1]{0}', space=sflag, size = 0x4, scoped, tag = 'scoped memory for tpu_custom_call.1']
    #allocation5 [shape = 'u8[16384]{0}', space=vmem, size = 0x4000, scoped, tag = 'input window, operand 1, single buffered']
    #allocation6 [shape = 's32[1]{0}', space=sflag, size = 0x4, scoped, tag = 'scoped memory for tpu_custom_call.1']
    #allocation7 [shape = 'u8[16384]{0}', space=vmem, size = 0x4000, scoped, tag = 'input window, operand 3, single buffered']
    #allocation8 [shape = 'u8[512]{0}', space=vmem, size = 0x400, scoped, tag = 'input window, operand 4, single buffered']
    #allocation9 [shape = 's32[1]{0}', space=sflag, size = 0x4, scoped, tag = 'scoped memory for tpu_custom_call.1']
    #allocation10 [shape = 'u8[16384]{0}', space=vmem, size = 0x4000, scoped, tag = 'input window, operand 5, single buffered']
    #allocation11 [shape = 'u8[65536]{0}', space=vmem, size = 0x10000, scoped, tag = 'input window, operand 7, single buffered']
    #allocation12 [shape = 's32[1]{0}', space=sflag, size = 0x4, scoped, tag = 'scoped memory for tpu_custom_call.1']
    #allocation13 [shape = 'u8[1024]{0}', space=vmem, size = 0x400, scoped, tag = 'output window, operand 0, single buffered']
    %14 = vsyncpa [#allocation3], 0
    %15 = vsyncpa [#allocation6], 0
    %16 = vsyncpa [#allocation9], 0
    %17 = vsyncpa [#allocation12], 0
    %18 = vsyncpa [#allocation4], 0
    // Predicated region
    $region2: #{tpu_custom_call.1} parent=1 // pred_check
      _
    $region3: #{tpu_custom_call.1} parent=1 // pred_check_branch
      %20 = sbr.rel (0) target = $region5
    $region4: #{tpu_custom_call.1} parent=1 // pred_region
      %22 = vsyncadd [#allocation3], 0
      %s24 = sshll.u32 %s0, 4
      %s25 = int_to_ptr.hbm [resolvable:$true] %s24
      %s26 = sshll.u32 [#allocation2], 4
      %s27 = int_to_ptr.vmem [resolvable:$true] %s26
      %29 = dma.hbm_to_vmem [thread:$0]  %s25, 32, %s27, [#allocation3]
    $region5: #{tpu_custom_call.1} parent=1 // pred_fallthru
      _
    // Predicated region
    $region6: #{tpu_custom_call.1} parent=1 // pred_check
      _
    $region7: #{tpu_custom_call.1} parent=1 // pred_check_branch
      %31 = sbr.rel (0) target = $region9
    $region8: #{tpu_custom_call.1} parent=1 // pred_region
      %33 = vsyncadd [#allocation6], 0
      %s34 = sshll.u32 %s1, 4
      %s35 = int_to_ptr.hbm [resolvable:$true] %s34
      %s36 = sshll.u32 [#allocation5], 4
      %s37 = int_to_ptr.vmem [resolvable:$true] %s36
      %42 = dma.hbm_to_vmem [thread:$0]  %s35, 512, %s37, [#allocation6], 128, 128, 8
    $region9: #{tpu_custom_call.1} parent=1 // pred_fallthru
      _
    // Predicated region
    $region10: #{tpu_custom_call.1} parent=1 // pred_check
      _
    $region11: #{tpu_custom_call.1} parent=1 // pred_check_branch
      %44 = sbr.rel (0) target = $region13
    $region12: #{tpu_custom_call.1} parent=1 // pred_region
      _
    $region13: #{tpu_custom_call.1} parent=1 // pred_fallthru
      _
    // Predicated region
    $region14: #{tpu_custom_call.1} parent=1 // pred_check
      _
    $region15: #{tpu_custom_call.1} parent=1 // pred_check_branch
      %46 = sbr.rel (0) target = $region17
    $region16: #{tpu_custom_call.1} parent=1 // pred_region
      %48 = vsyncadd [#allocation6], 0
      %s49 = sshll.u32 %s3, 4
      %s50 = int_to_ptr.hbm [resolvable:$true] %s49
      %s51 = sshll.u32 [#allocation7], 4
      %s52 = int_to_ptr.vmem [resolvable:$true] %s51
      %57 = dma.hbm_to_vmem [thread:$0]  %s50, 512, %s52, [#allocation6], 128, 128, 8
    $region17: #{tpu_custom_call.1} parent=1 // pred_fallthru
      _
    // Predicated region
    $region18: #{tpu_custom_call.1} parent=1 // pred_check
      _
    $region19: #{tpu_custom_call.1} parent=1 // pred_check_branch
      %59 = sbr.rel (0) target = $region21
    $region20: #{tpu_custom_call.1} parent=1 // pred_region
      %61 = vsyncadd [#allocation9], 0
      %s63 = sshll.u32 %s4, 4
      %s64 = int_to_ptr.hbm [resolvable:$true] %s63
      %s65 = sshll.u32 [#allocation8], 4
      %s66 = int_to_ptr.vmem [resolvable:$true] %s65
      %68 = dma.hbm_to_vmem [thread:$0]  %s64, 16, %s66, [#allocation9]
    $region21: #{tpu_custom_call.1} parent=1 // pred_fallthru
      _
    // Predicated region
    $region22: #{tpu_custom_call.1} parent=1 // pred_check
      _
    $region23: #{tpu_custom_call.1} parent=1 // pred_check_branch
      %70 = sbr.rel (0) target = $region25
    $region24: #{tpu_custom_call.1} parent=1 // pred_region
      %72 = vsyncadd [#allocation9], 0
      %s73 = sshll.u32 %s5, 4
      %s74 = int_to_ptr.hbm [resolvable:$true] %s73
      %s75 = sshll.u32 [#allocation10], 4
      %s76 = int_to_ptr.vmem [resolvable:$true] %s75
      %81 = dma.hbm_to_vmem [thread:$0]  %s74, 512, %s76, [#allocation9], 128, 128, 8
    $region25: #{tpu_custom_call.1} parent=1 // pred_fallthru
      _
    // Predicated region
    $region26: #{tpu_custom_call.1} parent=1 // pred_check
      _
    $region27: #{tpu_custom_call.1} parent=1 // pred_check_branch
      %83 = sbr.rel (0) target = $region29
    $region28: #{tpu_custom_call.1} parent=1 // pred_region
      _
    $region29: #{tpu_custom_call.1} parent=1 // pred_fallthru
      _
    // Predicated region
    $region30: #{tpu_custom_call.1} parent=1 // pred_check
      _
    $region31: #{tpu_custom_call.1} parent=1 // pred_check_branch
      %85 = sbr.rel (0) target = $region33
    $region32: #{tpu_custom_call.1} parent=1 // pred_region
      %87 = vsyncadd [#allocation12], 0
      %s88 = sshll.u32 %s7, 4
      %s89 = int_to_ptr.hbm [resolvable:$true] %s88
      %s90 = sshll.u32 [#allocation11], 4
      %s91 = int_to_ptr.vmem [resolvable:$true] %s90
      %96 = dma.hbm_to_vmem [thread:$0]  %s89, 2048, %s91, [#allocation12], 128, 128, 8
    $region33: #{tpu_custom_call.1} parent=1 // pred_fallthru
      _
    // Predicated region
    $region34: #{tpu_custom_call.1} parent=1 // pred_check
      _
    $region35: #{tpu_custom_call.1} parent=1 // pred_check_branch
      %98 = sbr.rel (0) target = $region37
    $region36: #{tpu_custom_call.1} parent=1 // pred_region
      _
    $region37: #{tpu_custom_call.1} parent=1 // pred_fallthru
      _
    // Predicated region
    $region38: #{tpu_custom_call.1} parent=1 // pred_check
      _
    $region39: #{tpu_custom_call.1} parent=1 // pred_check_branch
      %100 = sbr.rel (0) target = $region41
    $region40: #{tpu_custom_call.1} parent=1 // pred_region
      %102 = dma.done [#allocation3], 32
    $region41: #{tpu_custom_call.1} parent=1 // pred_fallthru
      _
    // Predicated region
    $region42: #{tpu_custom_call.1} parent=1 // pred_check
      _
    $region43: #{tpu_custom_call.1} parent=1 // pred_check_branch
      %104 = sbr.rel (0) target = $region45
    $region44: #{tpu_custom_call.1} parent=1 // pred_region
      %106 = dma.done [#allocation6], 512
    $region45: #{tpu_custom_call.1} parent=1 // pred_fallthru
      _
    // Predicated region
    $region46: #{tpu_custom_call.1} parent=1 // pred_check
      _
    $region47: #{tpu_custom_call.1} parent=1 // pred_check_branch
      %108 = sbr.rel (0) target = $region49
    $region48: #{tpu_custom_call.1} parent=1 // pred_region
      %110 = dma.done [#allocation6], 512
    $region49: #{tpu_custom_call.1} parent=1 // pred_fallthru
      _
    // Predicated region
    $region50: #{tpu_custom_call.1} parent=1 // pred_check
      _
    $region51: #{tpu_custom_call.1} parent=1 // pred_check_branch
      %112 = sbr.rel (0) target = $region53
    $region52: #{tpu_custom_call.1} parent=1 // pred_region
      %114 = dma.done [#allocation9], 16
    $region53: #{tpu_custom_call.1} parent=1 // pred_fallthru
      _
    // Predicated region
    $region54: #{tpu_custom_call.1} parent=1 // pred_check
      _
    $region55: #{tpu_custom_call.1} parent=1 // pred_check_branch
      %116 = sbr.rel (0) target = $region57
    $region56: #{tpu_custom_call.1} parent=1 // pred_region
      %118 = dma.done [#allocation9], 512
    $region57: #{tpu_custom_call.1} parent=1 // pred_fallthru
      _
    // Predicated region
    $region58: #{tpu_custom_call.1} parent=1 // pred_check
      _
    $region59: #{tpu_custom_call.1} parent=1 // pred_check_branch
      %120 = sbr.rel (0) target = $region61
    $region60: #{tpu_custom_call.1} parent=1 // pred_region
      %122 = dma.done [#allocation12], 2048
    $region61: #{tpu_custom_call.1} parent=1 // pred_fallthru
      _
    %v123 = vld [vmem:[#allocation2] sm:$0x3]
    %v124 = vld [vmem:[#allocation5] sm:$0xff]
    %v125 = vld [vmem:[#allocation5 + $0x8] sm:$0xff]
    %v126 = vld [vmem:[#allocation5 + $0x10] sm:$0xff]
    %v127 = vld [vmem:[#allocation5 + $0x18] sm:$0xff]
    %v128 = vld [vmem:[%s2] sm:$0x1]
    %v130 = vperm.slane %v128, 0
    %vm132 = vcmask 261120
    %v134 = vsel %vm132, %v123, 0
    %136 = vmatpush.msra.mxu0 0.0
    %137 = vmatpush.msra.mxu0 0.0
    %138 = vmatpush.msra.mxu0 0.0
    %139 = vmatpush.msra.mxu0 0.0
    %140 = vmatpush.msra.mxu0 0.0
    %141 = vmatpush.msra.mxu0 0.0
    %142 = vmatpush.msra.mxu0 0.0
    %143 = vmatpush.msra.mxu0 0.0
    %144 = vmatpush.msra.mxu0 0.0
    %145 = vmatpush.msra.mxu0 0.0
    %146 = vmatpush.msra.mxu0 0.0
    %147 = vmatpush.msra.mxu0 0.0
    %148 = vmatpush.msra.mxu0 %v127
    %149 = vmatpush.msra.mxu0 %v126
    %150 = vmatpush.msra.mxu0 %v125
    %151 = vmatpush.msra.mxu0 %v124
    %152 = vmatmul.f32.gmra.mxu0 %v134
    %v153 = vpop.f32.mrf.mxu0
    %v154 = vadd.f32 %v130, %v153
    %155 = vdwg.mxu0
    %vm156 = vcmp.gt.f32.partialorder %v154, 0.0
    %v157 = vmin.f32 %v154, 0.0
    %v158 = vmul.f32 %v157, 1.442695
    %v159 = vpow.pop %v158
    %v160 = vsub.f32 %v159, 1.0
    %v161 = vsel %vm156, %v154, %v160
    %v162 = vld [vmem:[#allocation7] sm:$0xff]
    %v163 = vld [vmem:[#allocation7 + $0x8] sm:$0xff]
    %v164 = vld [vmem:[#allocation7 + $0x10] sm:$0xff]
    %v165 = vld [vmem:[#allocation7 + $0x18] sm:$0xff]
    %v166 = vld [vmem:[#allocation8] sm:$0x1]
    %v168 = vperm.slane %v166, 0
    %v171 = vsel %vm132, %v161, 0
    %173 = vmatpush.msra.mxu0 0.0
    %174 = vmatpush.msra.mxu0 0.0
    %175 = vmatpush.msra.mxu0 0.0
    %176 = vmatpush.msra.mxu0 0.0
    %177 = vmatpush.msra.mxu0 0.0
    %178 = vmatpush.msra.mxu0 0.0
    %179 = vmatpush.msra.mxu0 0.0
    %180 = vmatpush.msra.mxu0 0.0
    %181 = vmatpush.msra.mxu0 0.0
    %182 = vmatpush.msra.mxu0 0.0
    %183 = vmatpush.msra.mxu0 0.0
    %184 = vmatpush.msra.mxu0 0.0
    %185 = vmatpush.msra.mxu0 %v165
    %186 = vmatpush.msra.mxu0 %v164
    %187 = vmatpush.msra.mxu0 %v163
    %188 = vmatpush.msra.mxu0 %v162
    %189 = vmatmul.f32.gmra.mxu0 %v171
    %v190 = vpop.f32.mrf.mxu0
    %v191 = vadd.f32 %v168, %v190
    %192 = vdwg.mxu0
    %vm193 = vcmp.gt.f32.partialorder %v191, 0.0
    %v194 = vmin.f32 %v191, 0.0
    %v195 = vmul.f32 %v194, 1.442695
    %v196 = vpow.pop %v195
    %v197 = vsub.f32 %v196, 1.0
    %v198 = vsel %vm193, %v191, %v197
    %v199 = vld [vmem:[#allocation10] sm:$0xff]
    %v200 = vld [vmem:[#allocation10 + $0x8] sm:$0xff]
    %v201 = vld [vmem:[#allocation10 + $0x10] sm:$0xff]
    %v202 = vld [vmem:[#allocation10 + $0x18] sm:$0xff]
    %v203 = vld [vmem:[%s6] sm:$0x1]
    %v205 = vperm.slane %v203, 0
    %v208 = vsel %vm132, %v198, 0
    %210 = vmatpush.msra.mxu0 0.0
    %211 = vmatpush.msra.mxu0 0.0
    %212 = vmatpush.msra.mxu0 0.0
    %213 = vmatpush.msra.mxu0 0.0
    %214 = vmatpush.msra.mxu0 0.0
    %215 = vmatpush.msra.mxu0 0.0
    %216 = vmatpush.msra.mxu0 0.0
    %217 = vmatpush.msra.mxu0 0.0
    %218 = vmatpush.msra.mxu0 0.0
    %219 = vmatpush.msra.mxu0 0.0
    %220 = vmatpush.msra.mxu0 0.0
    %221 = vmatpush.msra.mxu0 0.0
    %222 = vmatpush.msra.mxu0 %v202
    %223 = vmatpush.msra.mxu0 %v201
    %224 = vmatpush.msra.mxu0 %v200
    %225 = vmatpush.msra.mxu0 %v199
    %226 = vmatmul.f32.gmra.mxu0 %v208
    %v227 = vpop.f32.mrf.mxu0
    %v228 = vadd.f32 %v205, %v227
    %229 = vdwg.mxu0
    %vm230 = vcmask 1041408
    %v231 = vsel %vm230, %v228, -inf
    %232 = vmax.xlane.f32.xlu0 %v231
    %v233 = vpop.xlane.xlu0 %232
    %v234 = vsub.f32 %v228, %v233
    %v235 = vmul.f32 %v234, 1.442695
    %v236 = vpow.pop %v235
    %v237 = vld [vmem:[#allocation11] sm:$0xff]
    %v238 = vld [vmem:[#allocation11 + $0x8] sm:$0xff]
    %v239 = vld [vmem:[#allocation11 + $0x10] sm:$0xff]
    %v240 = vld [vmem:[#allocation11 + $0x18] sm:$0xff]
    %v241 = vld [vmem:[#allocation11 + $0x20] sm:$0xff]
    %v242 = vld [vmem:[#allocation11 + $0x28] sm:$0xff]
    %v243 = vld [vmem:[#allocation11 + $0x30] sm:$0xff]
    %v244 = vld [vmem:[#allocation11 + $0x38] sm:$0xff]
    %v245 = vld [vmem:[#allocation11 + $0x40] sm:$0xff]
    %v246 = vld [vmem:[#allocation11 + $0x48] sm:$0xff]
    %v247 = vld [vmem:[#allocation11 + $0x50] sm:$0xff]
    %v248 = vld [vmem:[#allocation11 + $0x58] sm:$0xff]
    %v249 = vld [vmem:[#allocation11 + $0x60] sm:$0xff]
    %v250 = vld [vmem:[#allocation11 + $0x68] sm:$0xff]
    %v251 = vld [vmem:[#allocation11 + $0x70] sm:$0xff]
    %v252 = vld [vmem:[#allocation11 + $0x78] sm:$0xff]
    %253 = vmatpush.msra.mxu0 %v252
    %254 = vmatpush.msra.mxu0 %v251
    %255 = vmatpush.msra.mxu0 %v250
    %256 = vmatpush.msra.mxu0 %v249
    %257 = vmatpush.msra.mxu0 %v248
    %258 = vmatpush.msra.mxu0 %v247
    %259 = vmatpush.msra.mxu0 %v246
    %260 = vmatpush.msra.mxu0 %v245
    %261 = vmatpush.msra.mxu0 %v244
    %262 = vmatpush.msra.mxu0 %v243
    %263 = vmatpush.msra.mxu0 %v242
    %264 = vmatpush.msra.mxu0 %v241
    %265 = vmatpush.msra.mxu0 %v240
    %266 = vmatpush.msra.mxu0 %v239
    %267 = vmatpush.msra.mxu0 %v238
    %268 = vmatpush.msra.mxu0 %v237
    %269 = vmatmul.f32.gmra.mxu0 %v236
    %v270 = vpop.f32.mrf.mxu0
    %v271 = vadd.f32 0.0, %v270
    %272 = vdwg.mxu0
    %v273 = vmax.f32 %v271, 1e-30
    %v274 = vrcp.pop %v273
    %v275 = vmul.f32 %v273, %v274
    %v276 = vsub.f32 1.0, %v275
    %v277 = vmul.f32 %v274, %v276
    %v278 = vadd.f32 %v274, %v277
    %vm279 = vweird.f32 %v273
    %vm280 = vweird.f32 %v274
    %vm281 = vmor %vm279, %vm280
    %v282 = vsel %vm281, %v274, %v278
    %v283 = vand.u32 2147483647, %v273
    %vm284 = vcmp.eq.f32.partialorder %v283, 8.507059e+37
    %v285 = vand.u32 %v273, 2147483648
    %v286 = vor.u32 1.1754944e-38, %v285
    %v287 = vsel %vm284, %v286, %v282
    %v288 = vmul.f32 %v236, %v287
    %v289 = vmul.f32 %v288, 0.99
    %v290 = vadd.f32 %v289, 0.00125
    %v291 = vmax.f32 %v290, 1.1920929e-07
    %v292 = vmin.f32 %v291, 0.9999999
    %v293 = vlog2.pop %v292
    %v294 = vmul.f32 %v293, 0.6931472
    %v295 = vld [vmem:[%s8] sm:$0x3]
    %v296 = vadd.f32 %v294, %v295
    %v297 = vlaneseq
    %v298 = vand.u32 %v297, 127
    %v299 = vcvt.s32.f32 %v298
    %v300 = vmul.f32 %v299, 0.125
    %v301 = vfloor.f32 %v300
    %vm302 = vcmp.eq.f32.partialorder %v301, 0.0
    %v303 = vsel %vm302, %v296, -inf
    %v304 = vsel %vm230, %v303, -inf
    %305 = vmax.xlane.f32.xlu0 %v304
    %v306 = vpop.xlane.xlu0 %305
    %vm307 = vcmp.eq.f32.partialorder %v296, %v306
    %vm308 = vmand %vm302, %vm307
    %v309 = vsel %vm308, 1.0, 0.0
    %vm310 = vcmp.eq.f32.partialorder %v301, 1.0
    %v311 = vsel %vm310, %v296, -inf
    %v312 = vsel %vm230, %v311, -inf
    %313 = vmax.xlane.f32.xlu0 %v312
    %v314 = vpop.xlane.xlu0 %313
    %vm315 = vcmp.eq.f32.partialorder %v296, %v314
    %vm316 = vmand %vm310, %vm315
    %v317 = vsel %vm316, 1.0, %v309
    %vm318 = vcmp.eq.f32.partialorder %v301, 2.0
    %v319 = vsel %vm318, %v296, -inf
    %v320 = vsel %vm230, %v319, -inf
    %321 = vmax.xlane.f32.xlu0 %v320
    %v322 = vpop.xlane.xlu0 %321
    %vm323 = vcmp.eq.f32.partialorder %v296, %v322
    %vm324 = vmand %vm318, %vm323
    %v325 = vsel %vm324, 1.0, %v317
    %vm326 = vcmp.eq.f32.partialorder %v301, 3.0
    %v327 = vsel %vm326, %v296, -inf
    %v328 = vsel %vm230, %v327, -inf
    %329 = vmax.xlane.f32.xlu0 %v328
    %v330 = vpop.xlane.xlu0 %329
    %vm331 = vcmp.eq.f32.partialorder %v296, %v330
    %vm332 = vmand %vm326, %vm331
    %v333 = vsel %vm332, 1.0, %v325
    %vm334 = vcmp.eq.f32.partialorder %v301, 4.0
    %v335 = vsel %vm334, %v296, -inf
    %v336 = vsel %vm230, %v335, -inf
    %337 = vmax.xlane.f32.xlu0 %v336
    %v338 = vpop.xlane.xlu0 %337
    %vm339 = vcmp.eq.f32.partialorder %v296, %v338
    %vm340 = vmand %vm334, %vm339
    %v341 = vsel %vm340, 1.0, %v333
    %vm342 = vcmp.eq.f32.partialorder %v301, 5.0
    %v343 = vsel %vm342, %v296, -inf
    %v344 = vsel %vm230, %v343, -inf
    %345 = vmax.xlane.f32.xlu0 %v344
    %v346 = vpop.xlane.xlu0 %345
    %vm347 = vcmp.eq.f32.partialorder %v296, %v346
    %vm348 = vmand %vm342, %vm347
    %v349 = vsel %vm348, 1.0, %v341
    %vm350 = vcmp.eq.f32.partialorder %v301, 6.0
    %v351 = vsel %vm350, %v296, -inf
    %v352 = vsel %vm230, %v351, -inf
    %353 = vmax.xlane.f32.xlu0 %v352
    %v354 = vpop.xlane.xlu0 %353
    %vm355 = vcmp.eq.f32.partialorder %v296, %v354
    %vm356 = vmand %vm350, %vm355
    %v357 = vsel %vm356, 1.0, %v349
    %vm358 = vcmp.eq.f32.partialorder %v301, 7.0
    %v359 = vsel %vm358, %v296, -inf
    %v360 = vsel %vm230, %v359, -inf
    %361 = vmax.xlane.f32.xlu0 %v360
    %v362 = vpop.xlane.xlu0 %361
    %vm363 = vcmp.eq.f32.partialorder %v296, %v362
    %vm364 = vmand %vm358, %vm363
    %v365 = vsel %vm364, 1.0, %v357
    %vm366 = vcmp.lt.s32.totalorder %v298, 64
    %v367 = vsel %vm366, %v365, %v294
    %368 = vst [vmem:[#allocation13] sm:$0x3] %v367
    // Predicated region
    $region62: #{tpu_custom_call.1} parent=1 // pred_check
      _
    $region63: #{tpu_custom_call.1} parent=1 // pred_check_branch
      %370 = sbr.rel (0) target = $region65
    $region64: #{tpu_custom_call.1} parent=1 // pred_region
      %372 = vsyncadd [#allocation4], 0
      %s374 = sshll.u32 [#allocation13], 4
      %s375 = int_to_ptr.vmem [resolvable:$true] %s374
      %s376 = sshll.u32 %s9, 4
      %s377 = int_to_ptr.hbm [resolvable:$true] %s376
      %379 = dma.vmem_to_hbm [thread:$0]  %s375, 32, %s377, [#allocation4]
    $region65: #{tpu_custom_call.1} parent=1 // pred_fallthru
      _
    // Predicated region
    $region66: #{tpu_custom_call.1} parent=1 // pred_check
      _
    $region67: #{tpu_custom_call.1} parent=1 // pred_check_branch
      %381 = sbr.rel (0) target = $region69
    $region68: #{tpu_custom_call.1} parent=1 // pred_region
      %383 = dma.done [#allocation4], 32
    $region69: #{tpu_custom_call.1} parent=1 // pred_fallthru
      _
    %384 = vsyncpa [#allocation3], 1
    %385 = vsyncpa [#allocation6], 1
    %386 = vsyncpa [#allocation9], 1
    %387 = vsyncpa [#allocation12], 1
    %388 = vsyncpa [#allocation4], 1

</llo_original>
